<compile_context>
chip_gen: v6e
topology: v6e:2x2x1
jax: 0.10.0
libtpu: 0.0.40
codegen_flags: <defaults>
</compile_context>

<pallas_src>
import functools
import math

import jax
import jax.numpy as jnp
import numpy as np
from jax.experimental import pallas as pl
from jax.experimental.pallas import tpu as pltpu


# ----------------------------------------------------------------------------
# helpers
# ----------------------------------------------------------------------------
def _pick_tile(dim, target, align):
    """Largest divisor of `dim` <= target, preferring multiples of `align`.
    Guarantees the grid divides the array exactly (full dim if nothing fits)."""
    if dim <= target:
        return dim
    fallback = dim
    for t in range(target, 0, -1):
        if dim % t == 0:
            if t % align == 0:
                return t
            if fallback == dim:
                fallback = t
    return fallback


def _bilinear_matrix(in_size, out_size):
    """Interpolation matrix R (out, in) for bilinear resize, align_corners=False."""
    m = np.zeros((out_size, in_size), dtype=np.float32)
    scale = in_size / out_size
    for o in range(out_size):
        src = (o + 0.5) * scale - 0.5
        src = min(max(src, 0.0), in_size - 1.0)
        lo = int(np.floor(src))
        hi = min(lo + 1, in_size - 1)
        w_hi = src - lo
        m[o, lo] += 1.0 - w_hi
        m[o, hi] += w_hi
    return jnp.asarray(m)


def make_positional_encoding(d_model, max_len=5000):
    """Same math as the PyTorch PositionalEncoding buffer, shape (max_len, d_model)."""
    position = np.arange(max_len, dtype=np.float32)[:, None]
    div_term = np.exp(np.arange(0, d_model, 2, dtype=np.float32)
                      * (-math.log(10000.0) / d_model))
    pe = np.zeros((max_len, d_model), dtype=np.float32)
    pe[:, 0::2] = np.sin(position * div_term)
    pe[:, 1::2] = np.cos(position * div_term)
    return jnp.asarray(pe)


def _im2col_3x3(x):
    """x: (N, H, W, C) -> (N*H*W, 9*C) zero-padded 'same' 3x3 patches (layout glue)."""
    N, H, W, C = x.shape
    xp = jnp.pad(x, ((0, 0), (1, 1), (1, 1), (0, 0)))
    cols = [xp[:, dy:dy + H, dx:dx + W, :] for dy in range(3) for dx in range(3)]
    return jnp.concatenate(cols, axis=-1).reshape(N * H * W, 9 * C)


# ----------------------------------------------------------------------------
# kernel: tiled matmul + bias (+ optional ReLU)   out = act(a @ b + bias)
# ----------------------------------------------------------------------------
def _matmul_kernel(a_ref, b_ref, bias_ref, o_ref, acc_ref, *, activation):
    @pl.when(pl.program_id(2) == 0)
    def _init():
        acc_ref[...] = jnp.zeros_like(acc_ref)

    acc_ref[...] += jnp.dot(a_ref[...], b_ref[...],
                            preferred_element_type=jnp.float32)

    @pl.when(pl.program_id(2) == pl.num_programs(2) - 1)
    def _finish():
        r = acc_ref[...] + bias_ref[...]
        if activation == "relu":
            r = jnp.maximum(r, 0.0)
        o_ref[...] = r.astype(o_ref.dtype)


def linear(x, w, b, *, activation=None):
    """x: (M, K) @ w: (K, N) + b: (N,), tiled Pallas matmul."""
    M, K = x.shape
    K2, N = w.shape
    assert K == K2
    tm = _pick_tile(M, 512, 8)
    tn = _pick_tile(N, 512, 128)
    tk = _pick_tile(K, 512, 128)
    b2 = b.reshape(1, N).astype(jnp.float32)
    kernel = functools.partial(_matmul_kernel, activation=activation)
    return pl.pallas_call(
        kernel,
        out_shape=jax.ShapeDtypeStruct((M, N), x.dtype),
        grid_spec=pltpu.PrefetchScalarGridSpec(
            num_scalar_prefetch=0,
            grid=(M // tm, N // tn, K // tk),
            in_specs=[
                pl.BlockSpec((tm, tk), lambda i, j, k: (i, k)),
                pl.BlockSpec((tk, tn), lambda i, j, k: (k, j)),
                pl.BlockSpec((1, tn), lambda i, j, k: (0, j)),
            ],
            out_specs=pl.BlockSpec((tm, tn), lambda i, j, k: (i, j)),
            scratch_shapes=[pltpu.VMEM((tm, tn), jnp.float32)],
        ),
        compiler_params=pltpu.CompilerParams(
            dimension_semantics=("parallel", "parallel", "arbitrary")),
    )(x, w, b2)


# ----------------------------------------------------------------------------
# kernel: fused matmul + bias + residual-add + LayerNorm
#         out = LN((a @ b + bias) + residual) * gamma + beta
# (used for both transformer sub-layers; requires the full feature dim N in one
#  output tile so the lane reduction of LayerNorm stays in-register)
# ----------------------------------------------------------------------------
def _matmul_res_ln_kernel(a_ref, b_ref, bias_ref, r_ref, g_ref, bt_ref,
                          o_ref, acc_ref, *, eps):
    @pl.when(pl.program_id(2) == 0)
    def _init():
        acc_ref[...] = jnp.zeros_like(acc_ref)

    acc_ref[...] += jnp.dot(a_ref[...], b_ref[...],
                            preferred_element_type=jnp.float32)

    @pl.when(pl.program_id(2) == pl.num_programs(2) - 1)
    def _finish():
        x = acc_ref[...] + bias_ref[...] + r_ref[...].astype(jnp.float32)
        mu = jnp.mean(x, axis=-1, keepdims=True)
        xc = x - mu
        var = jnp.mean(xc * xc, axis=-1, keepdims=True)
        y = xc * jax.lax.rsqrt(var + eps)
        o_ref[...] = (y * g_ref[...] + bt_ref[...]).astype(o_ref.dtype)


def linear_add_layernorm(x, w, b, res, gamma, beta, *, eps=1e-5):
    """Fused: LayerNorm((x @ w + b) + res) * gamma + beta."""
    M, K = x.shape
    K2, N = w.shape
    assert K == K2
    tn = _pick_tile(N, 512, 128)
    if tn != N:
        # fallback when the feature dim does not fit a single N tile
        return add_layernorm(linear(x, w, b), res, gamma, beta, eps=eps)
    tm = _pick_tile(M, 512, 8)
    tk = _pick_tile(K, 512, 128)
    b2 = b.reshape(1, N).astype(jnp.float32)
    g2 = gamma.reshape(1, N).astype(jnp.float32)
    bt2 = beta.reshape(1, N).astype(jnp.float32)
    return pl.pallas_call(
        functools.partial(_matmul_res_ln_kernel, eps=eps),
        out_shape=jax.ShapeDtypeStruct((M, N), x.dtype),
        grid_spec=pltpu.PrefetchScalarGridSpec(
            num_scalar_prefetch=0,
            grid=(M // tm, 1, K // tk),
            in_specs=[
                pl.BlockSpec((tm, tk), lambda i, j, k: (i, k)),
                pl.BlockSpec((tk, tn), lambda i, j, k: (k, j)),
                pl.BlockSpec((1, tn), lambda i, j, k: (0, j)),
                pl.BlockSpec((tm, tn), lambda i, j, k: (i, j)),  # residual, 1 fetch
                pl.BlockSpec((1, tn), lambda i, j, k: (0, j)),
                pl.BlockSpec((1, tn), lambda i, j, k: (0, j)),
            ],
            out_specs=pl.BlockSpec((tm, tn), lambda i, j, k: (i, j)),
            scratch_shapes=[pltpu.VMEM((tm, tn), jnp.float32)],
        ),
        compiler_params=pltpu.CompilerParams(
            dimension_semantics=("parallel", "parallel", "arbitrary")),
    )(x, w, b2, res, g2, bt2)


# ----------------------------------------------------------------------------
# kernel: channel-mean + bilinear resize to (32, 32)
# ----------------------------------------------------------------------------
def _mean_resize_kernel(x_ref, ry_ref, rx_ref, o_ref):
    # x_ref: (1, C, W, H); ry: (OH, W); rx: (OW, H); out: (1, OH, OW)
    g = jnp.mean(x_ref[0].astype(jnp.float32), axis=0)                 # (W, H)
    t = jnp.dot(ry_ref[...], g, preferred_element_type=jnp.float32)    # (OH, H)
    o = jax.lax.dot_general(t, rx_ref[...], (((1,), (1,)), ((), ())),
                            preferred_element_type=jnp.float32)        # (OH, OW)
    o_ref[0] = o.astype(o_ref.dtype)


def mean_and_resize(x_ncwh, out_size=32):
    """x: (N, C, W, H) -> (N, out_size, out_size): mean over C + bilinear resize."""
    N, C, W, H = x_ncwh.shape
    ry = _bilinear_matrix(W, out_size)
    rx = _bilinear_matrix(H, out_size)
    return pl.pallas_call(
        _mean_resize_kernel,
        out_shape=jax.ShapeDtypeStruct((N, out_size, out_size), jnp.float32),
        grid_spec=pltpu.PrefetchScalarGridSpec(
            num_scalar_prefetch=0,
            grid=(N,),
            in_specs=[
                pl.BlockSpec((1, C, W, H), lambda n: (n, 0, 0, 0)),
                pl.BlockSpec((out_size, W), lambda n: (0, 0)),
                pl.BlockSpec((out_size, H), lambda n: (0, 0)),
            ],
            out_specs=pl.BlockSpec((1, out_size, out_size), lambda n: (n, 0, 0)),
        ),
        compiler_params=pltpu.CompilerParams(dimension_semantics=("parallel",)),
    )(x_ncwh, ry, rx)


# ----------------------------------------------------------------------------
# kernel: 2x2 max-pool (elementwise max of the four strided views)
# ----------------------------------------------------------------------------
def _max4_kernel(a_ref, b_ref, c_ref, d_ref, o_ref):
    o_ref[...] = jnp.maximum(jnp.maximum(a_ref[...], b_ref[...]),
                             jnp.maximum(c_ref[...], d_ref[...]))


def maxpool2x2(x):
    """x: (N, H, W, C) -> (N, H//2, W//2, C)."""
    N, H, W, C = x.shape
    h2, w2 = H // 2, W // 2
    parts = [x[:, dy::2, dx::2, :].reshape(N * h2, w2 * C)
             for dy in range(2) for dx in range(2)]
    M, L = parts[0].shape
    tm = _pick_tile(M, 1024, 8)
    spec = pl.BlockSpec((tm, L), lambda i: (i, 0))
    out = pl.pallas_call(
        _max4_kernel,
        out_shape=jax.ShapeDtypeStruct((M, L), x.dtype),
        grid_spec=pltpu.PrefetchScalarGridSpec(
            num_scalar_prefetch=0,
            grid=(M // tm,),
            in_specs=[spec, spec, spec, spec],
            out_specs=spec,
        ),
        compiler_params=pltpu.CompilerParams(dimension_semantics=("parallel",)),
    )(*parts)
    return out.reshape(N, h2, w2, C)


# ----------------------------------------------------------------------------
# kernel: positional-encoding add (+ inverted dropout via integer threshold)
# ----------------------------------------------------------------------------
def _pe_eval_kernel(x_ref, pe_ref, o_ref):
    # x block (1, TS, D), pe block (TS, D) -> lane-dense, no relayout.
    o_ref[...] = (x_ref[...] + pe_ref[...]).astype(o_ref.dtype)


def _pe_dropout_kernel(x_ref, pe_ref, bits_ref, o_ref, *, threshold, scale):
    y = x_ref[...] + pe_ref[...]
    keep = bits_ref[...] >= jnp.int32(threshold)      # raw bits vs int threshold
    o_ref[...] = jnp.where(keep, y * jnp.float32(scale),
                           jnp.float32(0.0)).astype(o_ref.dtype)


def positional_encoding(x, pe, *, p=0.1, training=False, dropout_key=None):
    """x: (B, S, D) batch-first; pe: (max_len, D)."""
    B, S, D = x.shape
    pe_s = pe[:S, :]
    ts = _pick_tile(S, 512, 8)
    x_spec = pl.BlockSpec((1, ts, D), lambda s, b: (b, s, 0))
    pe_spec = pl.BlockSpec((ts, D), lambda s, b: (s, 0))  # resident across batch axis
    cp = pltpu.CompilerParams(dimension_semantics=("parallel", "parallel"))

    if training and p > 0.0:
        assert dropout_key is not None
        bits = jax.random.bits(dropout_key, (B, S, D), dtype=jnp.uint32)
        bits = jax.lax.bitcast_convert_type(bits, jnp.int32)
        thr_u32 = min(int(round(p * 2.0 ** 32)), 2 ** 32 - 1)
        threshold = thr_u32 - 2 ** 31          # signed-compare equivalent
        kernel = functools.partial(_pe_dropout_kernel, threshold=threshold,
                                   scale=1.0 / (1.0 - p))
        return pl.pallas_call(
            kernel,
            out_shape=jax.ShapeDtypeStruct((B, S, D), x.dtype),
            grid_spec=pltpu.PrefetchScalarGridSpec(
                num_scalar_prefetch=0,
                grid=(S // ts, B),
                in_specs=[x_spec, pe_spec, x_spec],
                out_specs=x_spec,
            ),
            compiler_params=cp,
        )(x, pe_s, bits)

    return pl.pallas_call(
        _pe_eval_kernel,
        out_shape=jax.ShapeDtypeStruct((B, S, D), x.dtype),
        grid_spec=pltpu.PrefetchScalarGridSpec(
            num_scalar_prefetch=0,
            grid=(S // ts, B),
            in_specs=[x_spec, pe_spec],
            out_specs=x_spec,
        ),
        compiler_params=cp,
    )(x, pe_s)


# ----------------------------------------------------------------------------
# kernel: standalone residual add + LayerNorm (fallback when D > one N tile)
# ----------------------------------------------------------------------------
def _add_layernorm_kernel(x_ref, r_ref, g_ref, b_ref, o_ref, *, eps):
    x = x_ref[...].astype(jnp.float32) + r_ref[...].astype(jnp.float32)
    mu = jnp.mean(x, axis=-1, keepdims=True)
    xc = x - mu
    var = jnp.mean(xc * xc, axis=-1, keepdims=True)
    y = xc * jax.lax.rsqrt(var + eps)
    o_ref[...] = (y * g_ref[...] + b_ref[...]).astype(o_ref.dtype)


def add_layernorm(x, res, gamma, beta, *, eps=1e-5):
    M, D = x.shape
    tm = _pick_tile(M, 512, 8)
    g2 = gamma.reshape(1, D)
    b2 = beta.reshape(1, D)
    row_spec = pl.BlockSpec((tm, D), lambda i: (i, 0))
    vec_spec = pl.BlockSpec((1, D), lambda i: (0, 0))
    return pl.pallas_call(
        functools.partial(_add_layernorm_kernel, eps=eps),
        out_shape=jax.ShapeDtypeStruct((M, D), x.dtype),
        grid_spec=pltpu.PrefetchScalarGridSpec(
            num_scalar_prefetch=0,
            grid=(M // tm,),
            in_specs=[row_spec, row_spec, vec_spec, vec_spec],
            out_specs=row_spec,
        ),
        compiler_params=pltpu.CompilerParams(dimension_semantics=("parallel",)),
    )(x, res, g2, b2)


# ----------------------------------------------------------------------------
# kernel: scaled-dot-product attention per (batch, head)
# ----------------------------------------------------------------------------
def _attn_kernel(q_ref, k_ref, v_ref, m_ref, o_ref, *, scale):
    q = q_ref[0].astype(jnp.float32)
    k = k_ref[0].astype(jnp.float32)
    v = v_ref[0].astype(jnp.float32)
    s = jax.lax.dot_general(q, k, (((1,), (1,)), ((), ())),
                            preferred_element_type=jnp.float32) * scale
    s = s + m_ref[...]
    s = s - jnp.max(s, axis=-1, keepdims=True)
    p = jnp.exp(s)
    p = p * pl.reciprocal(jnp.sum(p, axis=-1, keepdims=True), approx=False)
    o = jnp.dot(p, v, preferred_element_type=jnp.float32)
    o_ref[0] = o.astype(o_ref.dtype)


def multihead_attention(q, k, v, mask, *, scale):
    # TODO(synk): single-block attention per (batch, head); switch to a flash-style
    # online-softmax tiling for long sequences.
    BH, S, Dh = q.shape
    blk = pl.BlockSpec((1, S, Dh), lambda i: (i, 0, 0))
    return pl.pallas_call(
        functools.partial(_attn_kernel, scale=scale),
        out_shape=jax.ShapeDtypeStruct((BH, S, Dh), q.dtype),
        grid_spec=pltpu.PrefetchScalarGridSpec(
            num_scalar_prefetch=0,
            grid=(BH,),
            in_specs=[blk, blk, blk, pl.BlockSpec((S, S), lambda i: (0, 0))],
            out_specs=blk,
        ),
        compiler_params=pltpu.CompilerParams(dimension_semantics=("parallel",)),
    )(q, k, v, mask)


# ----------------------------------------------------------------------------
# transformer encoder layer (post-norm, ReLU FFN, eval-mode dropout)
# ----------------------------------------------------------------------------
def transformer_layer(x, mask, lp, *, nhead):
    # TODO(synk): training-mode dropout inside the encoder layer is omitted
    # (eval-mode identity); only the PositionalEncoding dropout is implemented.
    B, S, D = x.shape
    dh = D // nhead
    x2 = x.reshape(B * S, D)
    qkv = linear(x2, lp["w_in"], lp["b_in"])                  # (BS, 3D)
    q, k, v = jnp.split(qkv, 3, axis=-1)

    def to_heads(t):
        return (t.reshape(B, S, nhead, dh)
                 .transpose(0, 2, 1, 3)
                 .reshape(B * nhead, S, dh))

    o = multihead_attention(to_heads(q), to_heads(k), to_heads(v), mask,
                            scale=1.0 / math.sqrt(dh))
    o = o.reshape(B, nhead, S, dh).transpose(0, 2, 1, 3).reshape(B * S, D)
    # fused: out-proj matmul + bias + residual + LayerNorm (post-norm)
    h = linear_add_layernorm(o, lp["w_out"], lp["b_out"], x2,
                             lp["ln1_g"], lp["ln1_b"])
    f = linear(h, lp["w_ff1"], lp["b_ff1"], activation="relu")
    # fused: FFN second matmul + bias + residual + LayerNorm
    y = linear_add_layernorm(f, lp["w_ff2"], lp["b_ff2"], h,
                             lp["ln2_g"], lp["ln2_b"])
    return y.reshape(B, S, D)


# ----------------------------------------------------------------------------
# Critic forward (batch-first internally; equivalent to the (S, B, E) pipeline)
# ----------------------------------------------------------------------------
def critic_forward(s, mask, params, *, training=False, dropout_key=None):
    """s: (B, S, W, H, C) float32; mask: (S, S) additive float attention mask."""
    B, S, W, H, C = s.shape
    # permute(0,1,4,2,3) + mean over channel + bilinear resize to 32x32
    x = s.transpose(0, 1, 4, 2, 3).reshape(B * S, C, W, H)
    x = mean_and_resize(x, out_size=32)                       # (BS, 32, 32)
    x = x.reshape(B * S, 32, 32, 1)                           # NHWC grayscale
    # conv block 1 (im2col + matmul + ReLU) + maxpool
    x = linear(_im2col_3x3(x), params["conv1_w"], params["conv1_b"],
               activation="relu").reshape(B * S, 32, 32, 16)
    x = maxpool2x2(x)                                         # (BS, 16, 16, 16)
    # conv block 2 + maxpool
    x = linear(_im2col_3x3(x), params["conv2_w"], params["conv2_b"],
               activation="relu").reshape(B * S, 16, 16, 16)
    x = maxpool2x2(x)                                         # (BS, 8, 8, 16)
    # flatten (1024 features) + projection to hidden_dim
    x = x.reshape(B * S, 8 * 8 * 16)
    x = linear(x, params["proj_w"], params["proj_b"])         # (BS, D)
    x = x.reshape(B, S, -1)
    # positional encoding (+ inverted dropout when training)
    x = positional_encoding(x, params["pe"], p=params["dropout_p"],
                            training=training, dropout_key=dropout_key)
    # transformer encoder
    for lp in params["layers"]:
        x = transformer_layer(x, mask, lp, nhead=params["nhead"])
    # value head
    v = linear(x.reshape(B * S, x.shape[-1]), params["value_w"], params["value_b"])
    return v.reshape(B, S, 1)


# ----------------------------------------------------------------------------
# parameter construction (deterministic; orthogonal init is init-time only)
# ----------------------------------------------------------------------------
def init_params(key, *, hidden_dim, nhead, dim_feedforward, num_layers,
                max_len, dropout_p):
    keys = jax.random.split(key, 6 + num_layers)

    def dense(k, fan_in, shape, scale=None):
        scale = (1.0 / math.sqrt(fan_in)) if scale is None else scale
        return jax.random.normal(k, shape, dtype=jnp.float32) * scale

    D = hidden_dim
    params = {
        "conv1_w": dense(keys[0], 9 * 1, (9 * 1, 16)),
        "conv1_b": jnp.zeros((16,), jnp.float32),
        "conv2_w": dense(keys[1], 9 * 16, (9 * 16, 16)),
        "conv2_b": jnp.zeros((16,), jnp.float32),
        "proj_w": dense(keys[2], 1024, (1024, D)),
        "proj_b": jnp.zeros((D,), jnp.float32),
        "value_w": dense(keys[3], D, (D, 1), scale=0.01),
        "value_b": jnp.zeros((1,), jnp.float32),
        "pe": make_positional_encoding(D, max_len),
        "dropout_p": float(dropout_p),
        "nhead": int(nhead),
        "layers": [],
    }
    for li in range(num_layers):
        lk = jax.random.split(keys[4 + li], 4)
        params["layers"].append({
            "w_in": dense(lk[0], D, (D, 3 * D)),
            "b_in": jnp.zeros((3 * D,), jnp.float32),
            "w_out": dense(lk[1], D, (D, D)),
            "b_out": jnp.zeros((D,), jnp.float32),
            "ln1_g": jnp.ones((D,), jnp.float32),
            "ln1_b": jnp.zeros((D,), jnp.float32),
            "w_ff1": dense(lk[2], D, (D, dim_feedforward)),
            "b_ff1": jnp.zeros((dim_feedforward,), jnp.float32),
            "w_ff2": dense(lk[3], dim_feedforward, (dim_feedforward, D)),
            "b_ff2": jnp.zeros((D,), jnp.float32),
            "ln2_g": jnp.ones((D,), jnp.float32),
            "ln2_b": jnp.zeros((D,), jnp.float32),
        })
    return params


# ----------------------------------------------------------------------------
# pure-JAX reference (same weights, same glue, jnp compute) for validation
# ----------------------------------------------------------------------------
def _ref_maxpool(x):
    N, H, W, C = x.shape
    return x.reshape(N, H // 2, 2, W // 2, 2, C).max(axis=(2, 4))


def _ref_layernorm(x, g, b, eps=1e-5):
    mu = x.mean(-1, keepdims=True)
    var = ((x - mu) ** 2).mean(-1, keepdims=True)
    return (x - mu) * jax.lax.rsqrt(var + eps) * g + b


def critic_reference(s, mask, params):
    B, S, W, H, C = s.shape
    x = s.transpose(0, 1, 4, 2, 3).reshape(B * S, C, W, H)
    g = x.mean(axis=1)
    ry, rx = _bilinear_matrix(W, 32), _bilinear_matrix(H, 32)
    x = jnp.einsum("pw,nwh,qh->npq", ry, g, rx).reshape(B * S, 32, 32, 1)
    x = jnp.maximum(_im2col_3x3(x) @ params["conv1_w"] + params["conv1_b"], 0.0)
    x = _ref_maxpool(x.reshape(B * S, 32, 32, 16))
    x = jnp.maximum(_im2col_3x3(x) @ params["conv2_w"] + params["conv2_b"], 0.0)
    x = _ref_maxpool(x.reshape(B * S, 16, 16, 16))
    x = x.reshape(B * S, -1) @ params["proj_w"] + params["proj_b"]
    D = x.shape[-1]
    x = x.reshape(B, S, D) + params["pe"][:S][None, :, :]
    nhead = params["nhead"]
    dh = D // nhead
    for lp in params["layers"]:
        x2 = x.reshape(B * S, D)
        qkv = x2 @ lp["w_in"] + lp["b_in"]
        q, k, v = jnp.split(qkv, 3, axis=-1)
        def heads(t):
            return t.reshape(B, S, nhead, dh).transpose(0, 2, 1, 3)
        q, k, v = heads(q), heads(k), heads(v)
        sc = jnp.einsum("bhqd,bhkd->bhqk", q, k) / math.sqrt(dh) + mask
        p = jax.nn.softmax(sc, axis=-1)
        o = jnp.einsum("bhqk,bhkd->bhqd", p, v)
        o = o.transpose(0, 2, 1, 3).reshape(B * S, D) @ lp["w_out"] + lp["b_out"]
        h = _ref_layernorm(x2 + o, lp["ln1_g"], lp["ln1_b"])
        f = jnp.maximum(h @ lp["w_ff1"] + lp["b_ff1"], 0.0)
        f = f @ lp["w_ff2"] + lp["b_ff2"]
        x = _ref_layernorm(h + f, lp["ln2_g"], lp["ln2_b"]).reshape(B, S, D)
    v = x.reshape(B * S, D) @ params["value_w"] + params["value_b"]
    return v.reshape(B, S, 1)


# ----------------------------------------------------------------------------
if __name__ == "__main__":
    # small, module-consistent shapes
    B, S, W, H, C = 2, 4, 16, 16, 3
    hidden_dim, nhead, dim_ff, num_layers = 32, 4, 64, 2
    max_len, dropout_p = 64, 0.1

    root = jax.random.PRNGKey(0)
    k_par, k_in, k_drop = jax.random.split(root, 3)
    params = init_params(k_par, hidden_dim=hidden_dim, nhead=nhead,
                         dim_feedforward=dim_ff, num_layers=num_layers,
                         max_len=max_len, dropout_p=dropout_p)

    s = jax.random.normal(k_in, (B, S, W, H, C), dtype=jnp.float32)
    causal = jnp.tril(jnp.ones((S, S), dtype=bool))
    mask = jnp.where(causal, 0.0, -1e9).astype(jnp.float32)

    # eval-mode forward (deterministic) vs pure-JAX reference
    out_eval = jax.block_until_ready(critic_forward(s, mask, params, training=False))
    ref = jax.block_until_ready(critic_reference(s, mask, params))
    assert out_eval.shape == (B, S, 1)
    err = float(jnp.linalg.norm(out_eval - ref) / (jnp.linalg.norm(ref) + 1e-12))
    assert err < 0.1, f"relative L2 error too large: {err}"

    # training-mode forward exercises the PositionalEncoding dropout kernel
    out_train = jax.block_until_ready(
        critic_forward(s, mask, params, training=True, dropout_key=k_drop))
    assert out_train.shape == (B, S, 1)
    assert bool(jnp.all(jnp.isfinite(out_train)))

    print("KERNEL_OK")
</pallas_src>

<mosaic_0001>
module attributes {stable_mosaic.version = 11 : i64} {
  func.func @_mean_resize_kernel(%arg0: i32, %arg1: memref<1x3x16x16xf32, #tpu.memory_space<vmem>>, %arg2: memref<32x16xf32, #tpu.memory_space<vmem>>, %arg3: memref<32x16xf32, #tpu.memory_space<vmem>>, %arg4: memref<1x32x32xf32, #tpu.memory_space<vmem>>) attributes {dimension_semantics = [#tpu.dimension_semantics<parallel>], iteration_bounds = array<i64: 8>, scalar_prefetch = 0 : i64, scratch_operands = 0 : i64, tpu.core_type = #tpu.core_type<tc>, window_params = [{transform_indices = @transform_0, window_bounds = array<i64: 1, 3, 16, 16>}, {pipeline_mode = #tpu.pipeline_mode<synchronous>, transform_indices = @transform_1, window_bounds = array<i64: 32, 16>}, {pipeline_mode = #tpu.pipeline_mode<synchronous>, transform_indices = @transform_2, window_bounds = array<i64: 32, 16>}, {transform_indices = @transform_3, window_bounds = array<i64: 1, 32, 32>}]} {
    %c0 = arith.constant 0 : index
    %c0_0 = arith.constant 0 : index
    %c0_1 = arith.constant 0 : index
    %c0_2 = arith.constant 0 : index
    %0 = vector.load %arg1[%c0, %c0_0, %c0_1, %c0_2] : memref<1x3x16x16xf32, #tpu.memory_space<vmem>>, vector<1x3x16x16xf32>
    %1 = vector.shape_cast %0 : vector<1x3x16x16xf32> to vector<3x16x16xf32>
    %cst = arith.constant dense<0.000000e+00> : vector<16x16xf32>
    %2 = vector.multi_reduction <add>, %1, %cst [0] : vector<3x16x16xf32> to vector<16x16xf32>
    %cst_3 = arith.constant 3.000000e+00 : f32
    %3 = vector.broadcast %cst_3 : f32 to vector<16x16xf32>
    %4 = arith.divf %2, %3 : vector<16x16xf32>
    %c0_4 = arith.constant 0 : index
    %c0_5 = arith.constant 0 : index
    %5 = vector.load %arg2[%c0_4, %c0_5] : memref<32x16xf32, #tpu.memory_space<vmem>>, vector<32x16xf32>
    %cst_6 = arith.constant dense<0.000000e+00> : vector<32x16xf32>
    %6 = tpu.matmul %5, %4, %cst_6 {dimension_numbers = #tpu.dot_dimension_numbers<[1], [0], [0], [1], [0, 0, 1, 1], [], []>} : vector<32x16xf32>, vector<16x16xf32>, vector<32x16xf32> -> vector<32x16xf32>
    %c0_7 = arith.constant 0 : index
    %c0_8 = arith.constant 0 : index
    %7 = vector.load %arg3[%c0_7, %c0_8] : memref<32x16xf32, #tpu.memory_space<vmem>>, vector<32x16xf32>
    %cst_9 = arith.constant dense<0.000000e+00> : vector<32x32xf32>
    %8 = tpu.matmul %6, %7, %cst_9 {dimension_numbers = #tpu.dot_dimension_numbers<[1], [1], [0], [0], [0, 0, 1, 0], [], []>} : vector<32x16xf32>, vector<32x16xf32>, vector<32x32xf32> -> vector<32x32xf32>
    %c0_10 = arith.constant 0 : index
    %c0_11 = arith.constant 0 : index
    %c0_12 = arith.constant 0 : index
    %9 = vector.load %arg4[%c0_10, %c0_11, %c0_12] : memref<1x32x32xf32, #tpu.memory_space<vmem>>, vector<1x32x32xf32>
    %10 = vector.shape_cast %9 : vector<1x32x32xf32> to vector<32x32xf32>
    %11 = vector.shape_cast %8 : vector<32x32xf32> to vector<1x32x32xf32>
    tpu.vector_store %arg4[%c0_10, %c0_11, %c0_12], %11 {strides = array<i32>} : memref<1x32x32xf32, #tpu.memory_space<vmem>>, vector<1x32x32xf32>,
    return
  }
  func.func @transform_0(%arg0: i32) -> (i32, i32, i32, i32) {
    %c0_i32 = arith.constant 0 : i32
    %c0_i32_0 = arith.constant 0 : i32
    %c0_i32_1 = arith.constant 0 : i32
    %c0_i32_2 = arith.constant 0 : i32
    return %arg0, %c0_i32, %c0_i32_0, %c0_i32_1 : i32, i32, i32, i32
  }
  func.func @transform_1(%arg0: i32) -> (i32, i32) {
    %c0_i32 = arith.constant 0 : i32
    %c0_i32_0 = arith.constant 0 : i32
    %c0_i32_1 = arith.constant 0 : i32
    return %c0_i32, %c0_i32_0 : i32, i32
  }
  func.func @transform_2(%arg0: i32) -> (i32, i32) {
    %c0_i32 = arith.constant 0 : i32
    %c0_i32_0 = arith.constant 0 : i32
    %c0_i32_1 = arith.constant 0 : i32
    return %c0_i32, %c0_i32_0 : i32, i32
  }
  func.func @transform_3(%arg0: i32) -> (i32, i32, i32) {
    %c0_i32 = arith.constant 0 : i32
    %c0_i32_0 = arith.constant 0 : i32
    %c0_i32_1 = arith.constant 0 : i32
    return %arg0, %c0_i32, %c0_i32_0 : i32, i32, i32
  }
}

</mosaic_0001>

<llo_original>
// kernel: tpu_custom_call.1
$region0: #{tpu_custom_call.1}
  #allocation0 [shape = 'u32[]', space=smem, size = 0x4, offset = 0x4, fixed_abs, tag = 'smem constant byte address 0x4 - core index']
  #allocation1 [shape = 'u32[144,128]{1,0:T(1,128)}', space=vmem, size = 0x12000, scoped, tag = 'internal scratch']
  %s0 = inlined_call_operand.hbm [shape: f32[8,3,16,16], index: 0, kind: input, shape index: {}]
  %s1 = inlined_call_operand.vmem [shape: f32[32,16], index: 1, kind: input, shape index: {}]
  %s2 = inlined_call_operand.vmem [shape: f32[32,16], index: 2, kind: input, shape index: {}]
  %s3 = inlined_call_operand.hbm [shape: f32[8,32,32], index: 3, kind: output, shape index: {}]
  %s4 = sld [smem:[#allocation0]]
  $region49: #{tpu_custom_call.1} parent=0
    _
  %s6 = ssub.s32 1, %s4
  %s7 = scalar_select 0, %s6, %s4
  $region1: #{tpu_custom_call.1} parent=0
    #allocation2 [shape = 'u8[49152]{0}', space=vmem, size = 0xc000, scoped, tag = 'input window, operand 0']
    #allocation3 [shape = 's32[2]{0}', space=sflag, size = 0x8, scoped, tag = 'scoped memory for tpu_custom_call.1']
    #allocation4 [shape = 's32[2]{0}', space=sflag, size = 0x8, scoped, tag = 'scoped memory for tpu_custom_call.1']
    #allocation5 [shape = 'u8[32768]{0}', space=vmem, size = 0x8000, scoped, tag = 'output window, operand 0']
    %8 = vsyncpa [#allocation3], 0
    %s9 = scalar_lea.sflag [#allocation3], 1
    %10 = vsyncpa %s9, 0
    %11 = vsyncpa [#allocation4], 0
    %s12 = scalar_lea.sflag [#allocation4], 1
    %13 = vsyncpa %s12, 0
    loop: start=0, step=1, limit=10
    $region2: #{tpu_custom_call.1} parent=1 // loop_pre_header
      _
    $region3: #{tpu_custom_call.1} parent=1 // loop_header
      %s15 = sphi 0, %s19
      %p16 = scmp.ge.s32.totalorder %s15, 10
      %s25 = sphi 0, %s27
      %s28 = sphi 0, %s25
      %s29 = sphi 0, %s28
      %s45 = sphi 0, %s29
      %s49 = sphi 0, %s49
      %s51 = sphi 0, %s49
      %s52 = sphi 0, %s51
      %s66 = sphi 0, %s52
      %s70 = sphi 0, %s70
      %s72 = sphi 0, %s70
      %s73 = sphi 0, %s72
      %s87 = sphi 0, %s73
      %s93 = sphi 0, %s95
      %s96 = sphi 0, %s93
      %s97 = sphi 0, %s96
      %s113 = sphi 0, %s97
    $region4: #{tpu_custom_call.1} parent=1 // loop_header_branch
      %18 = sbr.rel (%p16) target = $region8
    $region5: #{tpu_custom_call.1} parent=1 // loop_body
      %s20 = ssub.s32 %s15, 1
      %s21 = ssub.s32 %s15, 2
      %s22 = sadd.s32 %s15, 1
      %s23 = ssub.s32 %s15, %s22
      %p24 = scmp.eq.s32.totalorder %s23, 0
      %s26 = sadd.s32 %s25, 1
      %s27 = scalar_select %p24, %s25, %s26
      %p30 = pneg %p24
      %p31 = scmp.eq.s32.totalorder %s15, 7
      %p32 = por %p30, %p31
      %p33 = scmp.ne.s32.totalorder %s25, %s28
      %p34 = scmp.eq.s32.totalorder %s15, 0
      %p35 = por %p33, %p34
      %p36 = scmp.ne.s32.totalorder %s25, %s28
      %p37 = scmp.eq.s32.totalorder %s20, 7
      %p38 = por %p36, %p37
      %p39 = scmp.ne.s32.totalorder %s28, %s29
      %p40 = scmp.eq.s32.totalorder %s20, 0
      %p41 = por %p39, %p40
      %p42 = scmp.ne.s32.totalorder %s28, %s29
      %p43 = scmp.eq.s32.totalorder %s21, 7
      %p44 = por %p42, %p43
      %p46 = scmp.ne.s32.totalorder %s29, %s45
      %p47 = scmp.eq.s32.totalorder %s21, 0
      %p48 = por %p46, %p47
      %s50 = sadd.s32 %s49, 1
      %p53 = scmp.eq.s32.totalorder %s15, 7
      %p54 = scmp.ne.s32.totalorder %s49, %s51
      %p55 = scmp.eq.s32.totalorder %s15, 0
      %p56 = por %p54, %p55
      %p57 = scmp.ne.s32.totalorder %s49, %s51
      %p58 = scmp.eq.s32.totalorder %s20, 7
      %p59 = por %p57, %p58
      %p60 = scmp.ne.s32.totalorder %s51, %s52
      %p61 = scmp.eq.s32.totalorder %s20, 0
      %p62 = por %p60, %p61
      %p63 = scmp.ne.s32.totalorder %s51, %s52
      %p64 = scmp.eq.s32.totalorder %s21, 7
      %p65 = por %p63, %p64
      %p67 = scmp.ne.s32.totalorder %s52, %s66
      %p68 = scmp.eq.s32.totalorder %s21, 0
      %p69 = por %p67, %p68
      %s71 = sadd.s32 %s70, 1
      %p74 = scmp.eq.s32.totalorder %s15, 7
      %p75 = scmp.ne.s32.totalorder %s70, %s72
      %p76 = scmp.eq.s32.totalorder %s15, 0
      %p77 = por %p75, %p76
      %p78 = scmp.ne.s32.totalorder %s70, %s72
      %p79 = scmp.eq.s32.totalorder %s20, 7
      %p80 = por %p78, %p79
      %p81 = scmp.ne.s32.totalorder %s72, %s73
      %p82 = scmp.eq.s32.totalorder %s20, 0
      %p83 = por %p81, %p82
      %p84 = scmp.ne.s32.totalorder %s72, %s73
      %p85 = scmp.eq.s32.totalorder %s21, 7
      %p86 = por %p84, %p85
      %p88 = scmp.ne.s32.totalorder %s73, %s87
      %p89 = scmp.eq.s32.totalorder %s21, 0
      %p90 = por %p88, %p89
      %s91 = ssub.s32 %s15, %s22
      %p92 = scmp.eq.s32.totalorder %s91, 0
      %s94 = sadd.s32 %s93, 1
      %s95 = scalar_select %p92, %s93, %s94
      %p98 = pneg %p92
      %p99 = scmp.eq.s32.totalorder %s15, 7
      %p100 = por %p98, %p99
      %p101 = scmp.ne.s32.totalorder %s93, %s96
      %p102 = scmp.eq.s32.totalorder %s15, 0
      %p103 = por %p101, %p102
      %p104 = scmp.ne.s32.totalorder %s93, %s96
      %p105 = scmp.eq.s32.totalorder %s20, 7
      %p106 = por %p104, %p105
      %p107 = scmp.ne.s32.totalorder %s96, %s97
      %p108 = scmp.eq.s32.totalorder %s20, 0
      %p109 = por %p107, %p108
      %p110 = scmp.ne.s32.totalorder %s96, %s97
      %p111 = scmp.eq.s32.totalorder %s21, 7
      %p112 = por %p110, %p111
      %p114 = scmp.ne.s32.totalorder %s97, %s113
      %p115 = scmp.eq.s32.totalorder %s21, 0
      %p116 = por %p114, %p115
      %p117 = scmp.le.s32.totalorder 1, %s15
      %p118 = scmp.lt.s32.totalorder %s15, 9
      %p119 = pnand %p117, %p118
      %p120 = pneg %p119
      // Predicated region
      $region9: #{tpu_custom_call.1} parent=5 // pred_check
        _
      $region10: #{tpu_custom_call.1} parent=5 // pred_check_branch
        %122 = sbr.rel (%p119) target = $region12
      $region11: #{tpu_custom_call.1} parent=5 // pred_region
        %s123 = ssub.s32 %s15, 1
        // Predicated region
        $region13: #{tpu_custom_call.1} parent=11 // pred_check
          %p124 = pneg %p62
        $region14: #{tpu_custom_call.1} parent=11 // pred_check_branch
          %126 = sbr.rel (%p124) target = $region16
        $region15: #{tpu_custom_call.1} parent=11 // pred_region
          _
        $region16: #{tpu_custom_call.1} parent=11 // pred_fallthru
          _
        // Predicated region
        $region17: #{tpu_custom_call.1} parent=11 // pred_check
          %p127 = pneg %p83
        $region18: #{tpu_custom_call.1} parent=11 // pred_check_branch
          %129 = sbr.rel (%p127) target = $region20
        $region19: #{tpu_custom_call.1} parent=11 // pred_region
          _
        $region20: #{tpu_custom_call.1} parent=11 // pred_fallthru
          _
      $region12: #{tpu_custom_call.1} parent=5 // pred_fallthru
        _
      %p130 = scmp.lt.s32.totalorder %s15, 8
      // Predicated region
      $region21: #{tpu_custom_call.1} parent=5 // pred_check
        %p131 = pneg %p130
      $region22: #{tpu_custom_call.1} parent=5 // pred_check_branch
        %133 = sbr.rel (%p131) target = $region24
      $region23: #{tpu_custom_call.1} parent=5 // pred_region
        // Predicated region
        $region25: #{tpu_custom_call.1} parent=23 // pred_check
          %p134 = pneg %p35
        $region26: #{tpu_custom_call.1} parent=23 // pred_check_branch
          %136 = sbr.rel (%p134) target = $region28
        $region27: #{tpu_custom_call.1} parent=23 // pred_region
          %s137 = sand.u32 %s25, 1
          %s138 = scalar_lea.sflag [#allocation3], %s137
          %s139 = sand.u32 %s25, 1
          %s140 = smul.addr %s139, 48
          %s141 = scalar_lea.vmem [#allocation2], %s140
          %s143 = ssub.s32 768, 768
          %144 = vsyncadd %s138, %s143
          %s145 = smul.addr %s15, 6
          %s146 = smul.addr %s145, 128
          %s147 = scalar_lea.hbm %s0, %s146
          %s148 = sshll.u32 %s141, 4
          %s149 = int_to_ptr.vmem [resolvable:$true] %s148
          %154 = dma.hbm_to_vmem [thread:$0]  %s147, 768, %s149, %s138, 128, 128, 8
        $region28: #{tpu_custom_call.1} parent=23 // pred_fallthru
          _
      $region24: #{tpu_custom_call.1} parent=5 // pred_fallthru
        _
      %p155 = scmp.le.s32.totalorder 1, %s15
      %p156 = scmp.lt.s32.totalorder %s15, 9
      %p157 = pnand %p155, %p156
      %p158 = pneg %p157
      // Predicated region
      $region29: #{tpu_custom_call.1} parent=5 // pred_check
        _
      $region30: #{tpu_custom_call.1} parent=5 // pred_check_branch
        %160 = sbr.rel (%p157) target = $region32
      $region31: #{tpu_custom_call.1} parent=5 // pred_region
        %s161 = ssub.s32 %s15, 1
        %s162 = sand.u32 %s28, 1
        %s163 = scalar_lea.sflag [#allocation3], %s162
        %s164 = sand.u32 %s28, 1
        %s165 = smul.addr %s164, 48
        %s166 = scalar_lea.vmem [#allocation2], %s165
        // Predicated region
        $region33: #{tpu_custom_call.1} parent=31 // pred_check
          %p167 = pneg %p41
        $region34: #{tpu_custom_call.1} parent=31 // pred_check_branch
          %169 = sbr.rel (%p167) target = $region36
        $region35: #{tpu_custom_call.1} parent=31 // pred_region
          %170 = dma.done %s163, 768
        $region36: #{tpu_custom_call.1} parent=31 // pred_fallthru
          _
        %s171 = sand.u32 %s28, 1
        %s172 = scalar_lea.sflag [#allocation3], %s171
        %s173 = sand.u32 %s28, 1
        %s174 = smul.addr %s173, 48
        %s175 = scalar_lea.vmem [#allocation2], %s174
        %p176 = pneg %p41
        %p177 = pneg %p38
        %p178 = pneg %p62
        %p179 = pneg %p59
        %p180 = pneg %p83
        %p181 = pneg %p80
        %p182 = pneg %p109
        %p183 = pneg %p106
        %s184 = sand.u32 %s96, 1
        %s185 = scalar_lea.sflag [#allocation4], %s184
        %s186 = sand.u32 %s96, 1
        %s187 = smul.addr %s186, 32
        %s188 = scalar_lea.vmem [#allocation5], %s187
        %v189 = vld [vmem:[%s166] sm:$0xff]
        %v190 = vld [vmem:[%s166 + $0x8] sm:$0xff]
        %v191 = vld [vmem:[%s166 + $0x10] sm:$0xff]
        %v192 = vld [vmem:[%s166 + $0x18] sm:$0xff]
        %v193 = vld [vmem:[%s166 + $0x20] sm:$0xff]
        %v194 = vld [vmem:[%s166 + $0x28] sm:$0xff]
        %vm195 = vcmask 130048
        %v196 = vsel %vm195, %v189, 0.0
        %v197 = vsel %vm195, %v191, 0.0
        %v198 = vadd.f32 %v196, %v197
        %v199 = vsel %vm195, %v193, 0.0
        %v200 = vadd.f32 %v198, %v199
        %v201 = vsel %vm195, %v190, 0.0
        %v202 = vsel %vm195, %v192, 0.0
        %v203 = vadd.f32 %v201, %v202
        %v204 = vsel %vm195, %v194, 0.0
        %v205 = vadd.f32 %v203, %v204
        %v206 = vrcp.pop 3.0
        %v207 = vmul.f32 %v200, %v206
        %v208 = vmul.f32 %v205, %v206
        %v209 = vld [vmem:[%s1] sm:$0xff]
        %v210 = vld [vmem:[%s1 + $0x8] sm:$0xff]
        %v211 = vld [vmem:[%s1 + $0x10] sm:$0xff]
        %v212 = vld [vmem:[%s1 + $0x18] sm:$0xff]
        %v214 = vsel %vm195, %v209, 0
        %v217 = vsel %vm195, %v210, 0
        %v220 = vsel %vm195, %v211, 0
        %v223 = vsel %vm195, %v212, 0
        %225 = vmatprep.subr.mxu0 0.0
        %226 = vmatpush1.msra.mxu0 0.0
        %227 = vmatprep.subr.mxu0 0.0
        %228 = vmatpush1.msra.mxu0 0.0
        %229 = vmatprep.subr.mxu0 0.0
        %230 = vmatpush1.msra.mxu0 0.0
        %231 = vmatprep.subr.mxu0 0.0
        %232 = vmatpush1.msra.mxu0 0.0
        %233 = vmatprep.subr.mxu0 0.0
        %234 = vmatpush1.msra.mxu0 0.0
        %235 = vmatprep.subr.mxu0 0.0
        %236 = vmatpush1.msra.mxu0 0.0
        %237 = vmatprep.subr.mxu0 0.0
        %238 = vmatpush1.msra.mxu0 0.0
        %239 = vmatprep.subr.mxu0 0.0
        %240 = vmatpush1.msra.mxu0 0.0
        %241 = vmatprep.subr.mxu0 0.0
        %242 = vmatpush1.msra.mxu0 0.0
        %243 = vmatprep.subr.mxu0 0.0
        %244 = vmatpush1.msra.mxu0 0.0
        %245 = vmatprep.subr.mxu0 0.0
        %246 = vmatpush1.msra.mxu0 0.0
        %247 = vmatprep.subr.mxu0 0.0
        %248 = vmatpush1.msra.mxu0 0.0
        %249 = vmatprep.subr.mxu0 0.0
        %250 = vmatpush1.msra.mxu0 0.0
        %251 = vmatprep.subr.mxu0 0.0
        %252 = vmatpush1.msra.mxu0 0.0
        %253 = vmatprep.subr.mxu0 0.0
        %254 = vmatpush1.msra.mxu0 %v208
        %255 = vmatprep.subr.mxu0 0.0
        %256 = vmatpush1.msra.mxu0 %v207
        %257 = vmatprep.subr.mxu0 0.0
        %258 = vmatpush2.msra.mxu0 0.0
        %259 = vmatprep.subr.mxu0 0.0
        %260 = vmatpush2.msra.mxu0 0.0
        %261 = vmatprep.subr.mxu0 0.0
        %262 = vmatpush2.msra.mxu0 0.0
        %263 = vmatprep.subr.mxu0 0.0
        %264 = vmatpush2.msra.mxu0 0.0
        %265 = vmatprep.subr.mxu0 0.0
        %266 = vmatpush2.msra.mxu0 0.0
        %267 = vmatprep.subr.mxu0 0.0
        %268 = vmatpush2.msra.mxu0 0.0
        %269 = vmatprep.subr.mxu0 0.0
        %270 = vmatpush2.msra.mxu0 0.0
        %271 = vmatprep.subr.mxu0 0.0
        %272 = vmatpush2.msra.mxu0 0.0
        %273 = vmatprep.subr.mxu0 0.0
        %274 = vmatpush2.msra.mxu0 0.0
        %275 = vmatprep.subr.mxu0 0.0
        %276 = vmatpush2.msra.mxu0 0.0
        %277 = vmatprep.subr.mxu0 0.0
        %278 = vmatpush2.msra.mxu0 0.0
        %279 = vmatprep.subr.mxu0 0.0
        %280 = vmatpush2.msra.mxu0 0.0
        %281 = vmatprep.subr.mxu0 0.0
        %282 = vmatpush2.msra.mxu0 0.0
        %283 = vmatprep.subr.mxu0 0.0
        %284 = vmatpush2.msra.mxu0 0.0
        %285 = vmatprep.subr.mxu0 0.0
        %286 = vmatpush2.msra.mxu0 0.0
        %287 = vmatprep.subr.mxu0 0.0
        %288 = vmatpush2.msra.mxu0 0.0
        %289 = vmatprep.mubr.f32.mxu0 0.0
        %290 = vmatmul.mubr.f32.gmra.mxu0 %v214
        %v291 = vpop.f32.mrf.mxu0
        %v292 = vadd.f32 0.0, %v291
        %v293 = vpop.f32.mrf.mxu0
        %294 = vmatprep.mubr.f32.mxu0 0.0
        %295 = vmatmul.mubr.f32.gmra.mxu0 %v217
        %v296 = vpop.f32.mrf.mxu0
        %v297 = vadd.f32 0.0, %v296
        %v298 = vpop.f32.mrf.mxu0
        %299 = vmatprep.mubr.f32.mxu0 0.0
        %300 = vmatmul.mubr.f32.gmra.mxu0 %v220
        %v301 = vpop.f32.mrf.mxu0
        %v302 = vadd.f32 0.0, %v301
        %v303 = vpop.f32.mrf.mxu0
        %304 = vmatprep.mubr.f32.mxu0 0.0
        %305 = vmatmul.mubr.f32.gmra.mxu0 %v223
        %v306 = vpop.f32.mrf.mxu0
        %v307 = vadd.f32 0.0, %v306
        %v308 = vpop.f32.mrf.mxu0
        %309 = vdwg.mxu0
        %v310 = vld [vmem:[%s2] sm:$0xff]
        %v311 = vld [vmem:[%s2 + $0x8] sm:$0xff]
        %v312 = vld [vmem:[%s2 + $0x10] sm:$0xff]
        %v313 = vld [vmem:[%s2 + $0x18] sm:$0xff]
        %v315 = vsel %vm195, %v292, 0
        %v318 = vsel %vm195, %v297, 0
        %v321 = vsel %vm195, %v302, 0
        %v324 = vsel %vm195, %v307, 0
        %v327 = vsel %vm195, %v310, 0
        %v330 = vsel %vm195, %v311, 0
        %v333 = vsel %vm195, %v312, 0
        %v336 = vsel %vm195, %v313, 0
        %338 = vmatprep.subr.mxu0 0.0
        %339 = vmatpush1.xpose.msra.mxu0 0.0
        %340 = vmatprep.subr.mxu0 0.0
        %341 = vmatpush1.xpose.msra.mxu0 0.0
        %342 = vmatprep.subr.mxu0 0.0
        %343 = vmatpush1.xpose.msra.mxu0 0.0
        %344 = vmatprep.subr.mxu0 0.0
        %345 = vmatpush1.xpose.msra.mxu0 0.0
        %346 = vmatprep.subr.mxu0 0.0
        %347 = vmatpush1.xpose.msra.mxu0 0.0
        %348 = vmatprep.subr.mxu0 0.0
        %349 = vmatpush1.xpose.msra.mxu0 0.0
        %350 = vmatprep.subr.mxu0 0.0
        %351 = vmatpush1.xpose.msra.mxu0 0.0
        %352 = vmatprep.subr.mxu0 0.0
        %353 = vmatpush1.xpose.msra.mxu0 0.0
        %354 = vmatprep.subr.mxu0 0.0
        %355 = vmatpush1.xpose.msra.mxu0 0.0
        %356 = vmatprep.subr.mxu0 0.0
        %357 = vmatpush1.xpose.msra.mxu0 0.0
        %358 = vmatprep.subr.mxu0 0.0
        %359 = vmatpush1.xpose.msra.mxu0 0.0
        %360 = vmatprep.subr.mxu0 0.0
        %361 = vmatpush1.xpose.msra.mxu0 0.0
        %362 = vmatprep.subr.mxu0 0.0
        %363 = vmatpush1.xpose.msra.mxu0 %v336
        %364 = vmatprep.subr.mxu0 0.0
        %365 = vmatpush1.xpose.msra.mxu0 %v333
        %366 = vmatprep.subr.mxu0 0.0
        %367 = vmatpush1.xpose.msra.mxu0 %v330
        %368 = vmatprep.subr.mxu0 0.0
        %369 = vmatpush1.xpose.msra.mxu0 %v327
        %370 = vmatprep.subr.mxu0 0.0
        %371 = vmatpush2.xpose.msra.mxu0 0.0
        %372 = vmatprep.subr.mxu0 0.0
        %373 = vmatpush2.xpose.msra.mxu0 0.0
        %374 = vmatprep.subr.mxu0 0.0
        %375 = vmatpush2.xpose.msra.mxu0 0.0
        %376 = vmatprep.subr.mxu0 0.0
        %377 = vmatpush2.xpose.msra.mxu0 0.0
        %378 = vmatprep.subr.mxu0 0.0
        %379 = vmatpush2.xpose.msra.mxu0 0.0
        %380 = vmatprep.subr.mxu0 0.0
        %381 = vmatpush2.xpose.msra.mxu0 0.0
        %382 = vmatprep.subr.mxu0 0.0
        %383 = vmatpush2.xpose.msra.mxu0 0.0
        %384 = vmatprep.subr.mxu0 0.0
        %385 = vmatpush2.xpose.msra.mxu0 0.0
        %386 = vmatprep.subr.mxu0 0.0
        %387 = vmatpush2.xpose.msra.mxu0 0.0
        %388 = vmatprep.subr.mxu0 0.0
        %389 = vmatpush2.xpose.msra.mxu0 0.0
        %390 = vmatprep.subr.mxu0 0.0
        %391 = vmatpush2.xpose.msra.mxu0 0.0
        %392 = vmatprep.subr.mxu0 0.0
        %393 = vmatpush2.xpose.msra.mxu0 0.0
        %394 = vmatprep.subr.mxu0 0.0
        %395 = vmatpush2.xpose.msra.mxu0 0.0
        %396 = vmatprep.subr.mxu0 0.0
        %397 = vmatpush2.xpose.msra.mxu0 0.0
        %398 = vmatprep.subr.mxu0 0.0
        %399 = vmatpush2.xpose.msra.mxu0 0.0
        %400 = vmatprep.subr.mxu0 0.0
        %401 = vmatpush2.xpose.msra.mxu0 0.0
        %402 = vmatprep.mubr.f32.mxu0 0.0
        %403 = vmatmul.mubr.f32.gmra.mxu0 %v315
        %v404 = vpop.f32.mrf.mxu0
        %v405 = vadd.f32 0.0, %v404
        %v406 = vpop.f32.mrf.mxu0
        %407 = vmatprep.mubr.f32.mxu0 0.0
        %408 = vmatmul.mubr.f32.gmra.mxu0 %v318
        %v409 = vpop.f32.mrf.mxu0
        %v410 = vadd.f32 0.0, %v409
        %v411 = vpop.f32.mrf.mxu0
        %412 = vmatprep.mubr.f32.mxu0 0.0
        %413 = vmatmul.mubr.f32.gmra.mxu0 %v321
        %v414 = vpop.f32.mrf.mxu0
        %v415 = vadd.f32 0.0, %v414
        %v416 = vpop.f32.mrf.mxu0
        %417 = vmatprep.mubr.f32.mxu0 0.0
        %418 = vmatmul.mubr.f32.gmra.mxu0 %v324
        %v419 = vpop.f32.mrf.mxu0
        %v420 = vadd.f32 0.0, %v419
        %v421 = vpop.f32.mrf.mxu0
        %422 = vdwg.mxu0
        %vm423 = vcmask 261120
        %424 = vst.msk [vmem:[%s188] sm:$0xff] %vm423, %v405
        %425 = vst.msk [vmem:[%s188 + $0x8] sm:$0xff] %vm423, %v410
        %426 = vst.msk [vmem:[%s188 + $0x10] sm:$0xff] %vm423, %v415
        %427 = vst.msk [vmem:[%s188 + $0x18] sm:$0xff] %vm423, %v420
        %s428 = sand.u32 %s96, 1
        %s429 = scalar_lea.sflag [#allocation4], %s428
        %s430 = sand.u32 %s96, 1
        %s431 = smul.addr %s430, 32
        %s432 = scalar_lea.vmem [#allocation5], %s431
        // Predicated region
        $region37: #{tpu_custom_call.1} parent=31 // pred_check
          %p433 = pneg %p106
        $region38: #{tpu_custom_call.1} parent=31 // pred_check_branch
          %435 = sbr.rel (%p433) target = $region40
        $region39: #{tpu_custom_call.1} parent=31 // pred_region
          %s437 = ssub.s32 512, 512
          %438 = vsyncadd %s429, %s437
          %s439 = smul.addr %s20, 4
          %s440 = smul.addr %s439, 128
          %s441 = scalar_lea.hbm %s3, %s440
          %s442 = sshll.u32 %s432, 4
          %s443 = int_to_ptr.vmem [resolvable:$true] %s442
          %448 = dma.vmem_to_hbm [thread:$0]  %s443, 512, %s441, %s429, 128, 128, 8
        $region40: #{tpu_custom_call.1} parent=31 // pred_fallthru
          _
      $region32: #{tpu_custom_call.1} parent=5 // pred_fallthru
        _
      %p449 = scmp.le.s32.totalorder 2, %s15
      // Predicated region
      $region41: #{tpu_custom_call.1} parent=5 // pred_check
        %p450 = pneg %p449
      $region42: #{tpu_custom_call.1} parent=5 // pred_check_branch
        %452 = sbr.rel (%p450) target = $region44
      $region43: #{tpu_custom_call.1} parent=5 // pred_region
        %s453 = ssub.s32 %s15, 2
        // Predicated region
        $region45: #{tpu_custom_call.1} parent=43 // pred_check
          %p454 = pneg %p112
        $region46: #{tpu_custom_call.1} parent=43 // pred_check_branch
          %456 = sbr.rel (%p454) target = $region48
        $region47: #{tpu_custom_call.1} parent=43 // pred_region
          %s457 = sand.u32 %s97, 1
          %s458 = scalar_lea.sflag [#allocation4], %s457
          %s459 = sand.u32 %s97, 1
          %s460 = smul.addr %s459, 32
          %s461 = scalar_lea.vmem [#allocation5], %s460
          %462 = dma.done %s458, 512
        $region48: #{tpu_custom_call.1} parent=43 // pred_fallthru
          _
      $region44: #{tpu_custom_call.1} parent=5 // pred_fallthru
        _
    $region6: #{tpu_custom_call.1} parent=1 // loop_footer
      %s19 = sadd.s32 1, %s15
    $region7: #{tpu_custom_call.1} parent=1 // loop_footer_branch
      %14 = sbr.rel target = $region3
    $region8: #{tpu_custom_call.1} parent=1 // loop_exit
      _
    %463 = vsyncpa [#allocation3], 1
    %s464 = scalar_lea.sflag [#allocation3], 1
    %465 = vsyncpa %s464, 1
    %466 = vsyncpa [#allocation4], 1
    %s467 = scalar_lea.sflag [#allocation4], 1
    %468 = vsyncpa %s467, 1

</llo_original>
